<compile_context>
chip_gen: v7x
topology: tpu7x:2x2x1
jax: 0.10.0
libtpu: 0.0.40
codegen_flags: <defaults>
</compile_context>

<pallas_src>
import jax
import jax.numpy as jnp
from jax.experimental import pallas as pl
from jax.experimental.pallas import tpu as pltpu

_BLOCK_BYTES = 4 * 1024 * 1024      # per-operand block target (v6e/v7x sweet spot)
_FALLBACK_BYTES = 1 * 1024 * 1024   # below this, plain jnp (pallas overhead dominates)


def _normalize_kernel(img_ref, sb_ref, out_ref):
    # out = img * (1/std) + (-mean/std); computed in f32, cast on store.
    x = img_ref[...].astype(jnp.float32)
    scale = sb_ref[:, 0:1]           # (row_tile, 1) f32, broadcasts along lanes
    bias = sb_ref[:, 1:2]            # (row_tile, 1) f32
    out_ref[...] = (x * scale + bias).astype(out_ref.dtype)


def _align_down(x, a):
    return max((x // a) * a, a)


def _pick_tiles(rows, lanes, itemsize):
    """Pick (row_tile, lane_tile) for a mem-bound elementwise 2-D kernel."""
    # Sublane alignment for packed dtypes: 8 (f32), 16 (bf16/f16), 32 (i8/fp8).
    align = max(32 // itemsize, 8)
    budget_elems = max(_BLOCK_BYTES // itemsize, align * 128)

    if lanes % 128 == 0 and align * lanes <= budget_elems:
        # Full-row contiguous block: one contiguous HBM burst per block, and
        # the inner grid axis disappears.
        lane_tile = lanes
    elif lanes % 128 == 0:
        lane_tile = max(_align_down(budget_elems // align, 128), 128)
    else:
        # Odd H*W: full extent if it fits the budget, otherwise a bounded
        # 128-aligned tile (Pallas masks the partial edge block).
        if align * lanes <= budget_elems:
            lane_tile = lanes
        else:
            lane_tile = max(_align_down(budget_elems // align, 128), 128)

    max_rows = max(budget_elems // lane_tile, align)
    if rows <= max_rows:
        row_tile = rows                      # full extent is always legal
    else:
        row_tile = _align_down(max_rows, align)

    # Megacore: guarantee >= 2 blocks (when rows allow) so both v7x
    # TensorCores get balanced work on this purely mem-bound kernel.
    if pl.cdiv(rows, row_tile) * pl.cdiv(lanes, lane_tile) < 2 and rows >= 2 * align:
        row_tile = _align_down(-(-rows // 2), align)   # ~ceil(rows/2), aligned

    return row_tile, lane_tile


def normalization_forward(img, mean, std):
    """(img - mean.view(-1,1,1)) / std.view(-1,1,1) for NCHW `img`."""
    N, C, H, W = img.shape
    rows, lanes = N * C, H * W
    itemsize = jnp.dtype(img.dtype).itemsize

    mean_f32 = jnp.asarray(mean, dtype=jnp.float32).reshape(-1)
    std_f32 = jnp.asarray(std, dtype=jnp.float32).reshape(-1)
    assert mean_f32.shape == (C,) and std_f32.shape == (C,)

    # Small-input fallback: for tiny tensors the fixed pallas_call/grid/DMA
    # setup dominates; let XLA fuse the elementwise op with its neighbors.
    if rows * lanes * itemsize < _FALLBACK_BYTES:
        out = (img.astype(jnp.float32) - mean_f32.reshape(1, C, 1, 1)) / std_f32.reshape(
            1, C, 1, 1
        )
        return out.astype(img.dtype)

    # Fold into an affine transform (kept in f32): scale = 1/std,
    # bias = -mean/std, packed as one (rows, 2) side operand; row = n*C + c.
    scale_c = 1.0 / std_f32
    bias_c = -mean_f32 / std_f32
    scale_bias = jnp.stack([jnp.tile(scale_c, N), jnp.tile(bias_c, N)], axis=-1)  # (rows, 2)

    # Free contiguous reshape: NCHW -> (N*C, H*W), lane-dense last dim.
    img2d = img.reshape(rows, lanes)

    row_tile, lane_tile = _pick_tiles(rows, lanes, itemsize)
    grid = (pl.cdiv(rows, row_tile), pl.cdiv(lanes, lane_tile))

    # in + out blocks, double-buffered, plus the tiny side operand + headroom.
    # Raising the scoped limit explicitly keeps 4 MiB blocks legal on v5e's
    # 16 MiB default as well as v6e/v7x (well under physical VMEM everywhere).
    block_bytes = row_tile * lane_tile * itemsize
    vmem_limit = int(min(64 << 20, max(16 << 20, 6 * block_bytes)))

    # TODO(synk): if xprof shows exposed DMA on v7x, sweep
    # pipeline_mode=pl.Buffered(3) on the img/out specs.
    out2d = pl.pallas_call(
        _normalize_kernel,
        out_shape=jax.ShapeDtypeStruct((rows, lanes), img.dtype),
        grid=grid,
        in_specs=[
            pl.BlockSpec((row_tile, lane_tile), lambda r, l: (r, l)),  # img
            pl.BlockSpec((row_tile, 2), lambda r, l: (r, 0)),          # scale|bias
        ],
        out_specs=pl.BlockSpec((row_tile, lane_tile), lambda r, l: (r, l)),
        compiler_params=pltpu.CompilerParams(
            dimension_semantics=("parallel", "parallel"),
            vmem_limit_bytes=vmem_limit,
        ),
        cost_estimate=pl.CostEstimate(
            flops=2 * rows * lanes,
            transcendentals=0,
            bytes_accessed=2 * rows * lanes * itemsize + rows * 2 * 4,
        ),
    )(img2d, scale_bias)

    return out2d.reshape(N, C, H, W)


if __name__ == "__main__":
    key = jax.random.PRNGKey(0)
    k1, k2, k3 = jax.random.split(key, 3)

    C = 4
    mean = jnp.array([0.485, 0.456, 0.406, 0.5], dtype=jnp.float32)
    std = jnp.array([0.229, 0.224, 0.225, 0.25], dtype=jnp.float32)

    # 1) Small spec-sized input (2,4,16,16): exercises the fused-jnp fallback.
    img_small = jax.random.normal(k1, (2, C, 16, 16), dtype=jnp.float32)
    out_small = jax.block_until_ready(normalization_forward(img_small, mean, std))
    ref_small = (img_small - mean.reshape(1, C, 1, 1)) / std.reshape(1, C, 1, 1)
    assert out_small.shape == img_small.shape
    assert jnp.allclose(out_small, ref_small, atol=1e-5, rtol=1e-5)

    # 2) Larger f32 input (2 MiB) that exercises the Pallas kernel; the row
    #    axis is split into >= 2 blocks for v7x megacore.
    img_f32 = jax.random.normal(k2, (8, C, 128, 128), dtype=jnp.float32)
    out_f32 = jax.block_until_ready(normalization_forward(img_f32, mean, std))
    ref_f32 = (img_f32 - mean.reshape(1, C, 1, 1)) / std.reshape(1, C, 1, 1)
    assert out_f32.shape == img_f32.shape
    # FMA (x*(1/std) - mean/std) vs divide differs by a few f32 ulps.
    assert jnp.allclose(out_f32, ref_f32, atol=1e-5, rtol=1e-5)

    # 3) bf16 input: verifies the f32-compute / cast-on-store path.
    img_bf16 = jax.random.normal(k3, (8, C, 128, 128), dtype=jnp.bfloat16)
    out_bf16 = jax.block_until_ready(normalization_forward(img_bf16, mean, std))
    ref_bf16 = (
        (img_bf16.astype(jnp.float32) - mean.reshape(1, C, 1, 1))
        / std.reshape(1, C, 1, 1)
    ).astype(jnp.bfloat16)
    assert out_bf16.dtype == jnp.bfloat16
    assert jnp.allclose(
        out_bf16.astype(jnp.float32),
        ref_bf16.astype(jnp.float32),
        atol=2e-2,
        rtol=2e-2,
    )

    print("KERNEL_OK")
</pallas_src>

<mosaic_0001>
module attributes {stable_mosaic.version = 11 : i64} {
  func.func @_normalize_kernel(%arg0: i32, %arg1: i32, %arg2: memref<16x16384xf32, #tpu.memory_space<vmem>>, %arg3: memref<16x2xf32, #tpu.memory_space<vmem>>, %arg4: memref<16x16384xf32, #tpu.memory_space<vmem>>) attributes {dimension_semantics = [#tpu.dimension_semantics<parallel>, #tpu.dimension_semantics<parallel>], iteration_bounds = array<i64: 2, 1>, scalar_prefetch = 0 : i64, scratch_operands = 0 : i64, tpu.core_type = #tpu.core_type<tc>, window_params = [{transform_indices = @transform_0, window_bounds = array<i64: 16, 16384>}, {transform_indices = @transform_1, window_bounds = array<i64: 16, 2>}, {transform_indices = @transform_2, window_bounds = array<i64: 16, 16384>}]} {
    %c0 = arith.constant 0 : index
    %c0_0 = arith.constant 0 : index
    %0 = vector.load %arg2[%c0, %c0_0] : memref<16x16384xf32, #tpu.memory_space<vmem>>, vector<16x16384xf32>
    %c0_1 = arith.constant 0 : index
    %c0_2 = arith.constant 0 : index
    %1 = vector.load %arg3[%c0_1, %c0_2] : memref<16x2xf32, #tpu.memory_space<vmem>>, vector<16x1xf32>
    %c0_3 = arith.constant 0 : index
    %c1 = arith.constant 1 : index
    %2 = vector.load %arg3[%c0_3, %c1] : memref<16x2xf32, #tpu.memory_space<vmem>>, vector<16x1xf32>
    %3 = vector.broadcast %1 : vector<16x1xf32> to vector<16x16384xf32>
    %4 = arith.mulf %0, %3 : vector<16x16384xf32>
    %5 = vector.broadcast %2 : vector<16x1xf32> to vector<16x16384xf32>
    %6 = arith.addf %4, %5 : vector<16x16384xf32>
    %c0_4 = arith.constant 0 : index
    %c0_5 = arith.constant 0 : index
    %7 = vector.load %arg4[%c0_4, %c0_5] : memref<16x16384xf32, #tpu.memory_space<vmem>>, vector<16x16384xf32>
    tpu.vector_store %arg4[%c0_4, %c0_5], %6 {strides = array<i32>} : memref<16x16384xf32, #tpu.memory_space<vmem>>, vector<16x16384xf32>,
    return
  }
  func.func @transform_0(%arg0: i32, %arg1: i32) -> (i32, i32) {
    %c0_i32 = arith.constant 0 : i32
    return %arg0, %arg1 : i32, i32
  }
  func.func @transform_1(%arg0: i32, %arg1: i32) -> (i32, i32) {
    %c0_i32 = arith.constant 0 : i32
    %c0_i32_0 = arith.constant 0 : i32
    return %arg0, %c0_i32 : i32, i32
  }
  func.func @transform_2(%arg0: i32, %arg1: i32) -> (i32, i32) {
    %c0_i32 = arith.constant 0 : i32
    return %arg0, %arg1 : i32, i32
  }
}

</mosaic_0001>

<llo_original>
// kernel: tpu_custom_call.1
$region0: #{tpu_custom_call.1}
  #allocation0 [shape = 'u32[]', space=smem, size = 0x4, offset = 0x4, fixed_abs, tag = 'smem constant byte address 0x4 - core index']
  #allocation1 [shape = 'u32[144,128]{1,0:T(1,128)}', space=vmem, size = 0x12000, scoped, tag = 'internal scratch']
  %s0 = inlined_call_operand.hbm [shape: f32[32,16384], index: 0, kind: input, shape index: {}]
  %s1 = inlined_call_operand.vmem [shape: f32[32,2], index: 1, kind: input, shape index: {}]
  %s2 = inlined_call_operand.hbm [shape: f32[32,16384], index: 2, kind: output, shape index: {}]
  %s3 = sld [smem:[#allocation0]]
  $region45: #{tpu_custom_call.1} parent=0
    _
  %s5 = ssub.s32 1, %s3
  %s6 = scalar_select 0, %s5, %s3
  $region1: #{tpu_custom_call.1} parent=0
    #allocation2 [shape = 'u8[2097152]{0}', space=vmem, size = 0x200000, scoped, tag = 'input window, operand 0']
    #allocation3 [shape = 's32[2]{0}', space=sflag, size = 0x8, scoped, tag = 'scoped memory for tpu_custom_call.1']
    #allocation4 [shape = 's32[2]{0}', space=sflag, size = 0x8, scoped, tag = 'scoped memory for tpu_custom_call.1']
    #allocation5 [shape = 'u8[2097152]{0}', space=vmem, size = 0x200000, scoped, tag = 'output window, operand 0']
    %7 = vsyncpa [#allocation3], 0
    %s8 = scalar_lea.sflag [#allocation3], 1
    %9 = vsyncpa %s8, 0
    %10 = vsyncpa [#allocation4], 0
    %s11 = scalar_lea.sflag [#allocation4], 1
    %12 = vsyncpa %s11, 0
    loop: start=0, step=1, limit=4
    $region2: #{tpu_custom_call.1} parent=1 // loop_pre_header
      _
    $region3: #{tpu_custom_call.1} parent=1 // loop_header
      %s14 = sphi 0, %s18
      %p15 = scmp.ge.s32.totalorder %s14, 4
      %s21 = sphi 0, %s33
      %s22 = sphi 0, %s29
      %s23 = sphi 0, %s21
      %s24 = sphi 0, %s22
      %s25 = sphi 0, %s23
      %s26 = sphi 0, %s24
      %s38 = sphi 0, %s40
      %s41 = sphi 0, %s38
      %s42 = sphi 0, %s41
      %s58 = sphi 0, %s42
      %s64 = sphi 0, %s66
      %s67 = sphi 0, %s64
      %s68 = sphi 0, %s67
      %s84 = sphi 0, %s68
      %s92 = sphi 0, %s94
      %s95 = sphi 0, %s92
      %s96 = sphi 0, %s95
      %s112 = sphi 0, %s96
    $region4: #{tpu_custom_call.1} parent=1 // loop_header_branch
      %17 = sbr.rel (%p15) target = $region8
    $region5: #{tpu_custom_call.1} parent=1 // loop_body
      %s19 = ssub.s32 %s14, 1
      %s20 = ssub.s32 %s14, 2
      %s27 = sadd.s32 1, %s22
      %p28 = scmp.ge.s32.totalorder %s27, 1
      %s29 = scalar_select %p28, 0, %s27
      %s30 = sadd.s32 1, %s21
      %s31 = scalar_select %p28, %s30, %s21
      %p32 = scmp.ge.s32.totalorder %s31, 2
      %s33 = scalar_select %p32, 0, %s31
      %s34 = ssub.s32 %s21, %s33
      %s35 = ssub.s32 %s22, %s29
      %s36 = sor.u32 %s34, %s35
      %p37 = scmp.eq.s32.totalorder %s36, 0
      %s39 = sadd.s32 %s38, 1
      %s40 = scalar_select %p37, %s38, %s39
      %p43 = pneg %p37
      %p44 = scmp.eq.s32.totalorder %s14, 1
      %p45 = por %p43, %p44
      %p46 = scmp.ne.s32.totalorder %s38, %s41
      %p47 = scmp.eq.s32.totalorder %s14, 0
      %p48 = por %p46, %p47
      %p49 = scmp.ne.s32.totalorder %s38, %s41
      %p50 = scmp.eq.s32.totalorder %s19, 1
      %p51 = por %p49, %p50
      %p52 = scmp.ne.s32.totalorder %s41, %s42
      %p53 = scmp.eq.s32.totalorder %s19, 0
      %p54 = por %p52, %p53
      %p55 = scmp.ne.s32.totalorder %s41, %s42
      %p56 = scmp.eq.s32.totalorder %s20, 1
      %p57 = por %p55, %p56
      %p59 = scmp.ne.s32.totalorder %s42, %s58
      %p60 = scmp.eq.s32.totalorder %s20, 0
      %p61 = por %p59, %p60
      %s62 = ssub.s32 %s21, %s33
      %p63 = scmp.eq.s32.totalorder %s62, 0
      %s65 = sadd.s32 %s64, 1
      %s66 = scalar_select %p63, %s64, %s65
      %p69 = pneg %p63
      %p70 = scmp.eq.s32.totalorder %s14, 1
      %p71 = por %p69, %p70
      %p72 = scmp.ne.s32.totalorder %s64, %s67
      %p73 = scmp.eq.s32.totalorder %s14, 0
      %p74 = por %p72, %p73
      %p75 = scmp.ne.s32.totalorder %s64, %s67
      %p76 = scmp.eq.s32.totalorder %s19, 1
      %p77 = por %p75, %p76
      %p78 = scmp.ne.s32.totalorder %s67, %s68
      %p79 = scmp.eq.s32.totalorder %s19, 0
      %p80 = por %p78, %p79
      %p81 = scmp.ne.s32.totalorder %s67, %s68
      %p82 = scmp.eq.s32.totalorder %s20, 1
      %p83 = por %p81, %p82
      %p85 = scmp.ne.s32.totalorder %s68, %s84
      %p86 = scmp.eq.s32.totalorder %s20, 0
      %p87 = por %p85, %p86
      %s88 = ssub.s32 %s21, %s33
      %s89 = ssub.s32 %s22, %s29
      %s90 = sor.u32 %s88, %s89
      %p91 = scmp.eq.s32.totalorder %s90, 0
      %s93 = sadd.s32 %s92, 1
      %s94 = scalar_select %p91, %s92, %s93
      %p97 = pneg %p91
      %p98 = scmp.eq.s32.totalorder %s14, 1
      %p99 = por %p97, %p98
      %p100 = scmp.ne.s32.totalorder %s92, %s95
      %p101 = scmp.eq.s32.totalorder %s14, 0
      %p102 = por %p100, %p101
      %p103 = scmp.ne.s32.totalorder %s92, %s95
      %p104 = scmp.eq.s32.totalorder %s19, 1
      %p105 = por %p103, %p104
      %p106 = scmp.ne.s32.totalorder %s95, %s96
      %p107 = scmp.eq.s32.totalorder %s19, 0
      %p108 = por %p106, %p107
      %p109 = scmp.ne.s32.totalorder %s95, %s96
      %p110 = scmp.eq.s32.totalorder %s20, 1
      %p111 = por %p109, %p110
      %p113 = scmp.ne.s32.totalorder %s96, %s112
      %p114 = scmp.eq.s32.totalorder %s20, 0
      %p115 = por %p113, %p114
      %p116 = scmp.le.s32.totalorder 1, %s14
      %p117 = scmp.lt.s32.totalorder %s14, 3
      %p118 = pnand %p116, %p117
      %p119 = pneg %p118
      // Predicated region
      $region9: #{tpu_custom_call.1} parent=5 // pred_check
        _
      $region10: #{tpu_custom_call.1} parent=5 // pred_check_branch
        %121 = sbr.rel (%p118) target = $region12
      $region11: #{tpu_custom_call.1} parent=5 // pred_region
        %s122 = ssub.s32 %s14, 1
      $region12: #{tpu_custom_call.1} parent=5 // pred_fallthru
        _
      %p123 = scmp.lt.s32.totalorder %s14, 2
      // Predicated region
      $region13: #{tpu_custom_call.1} parent=5 // pred_check
        %p124 = pneg %p123
      $region14: #{tpu_custom_call.1} parent=5 // pred_check_branch
        %126 = sbr.rel (%p124) target = $region16
      $region15: #{tpu_custom_call.1} parent=5 // pred_region
        // Predicated region
        $region17: #{tpu_custom_call.1} parent=15 // pred_check
          %p127 = pneg %p48
        $region18: #{tpu_custom_call.1} parent=15 // pred_check_branch
          %129 = sbr.rel (%p127) target = $region20
        $region19: #{tpu_custom_call.1} parent=15 // pred_region
          %s130 = sand.u32 %s38, 1
          %s131 = scalar_lea.sflag [#allocation3], %s130
          %s132 = sand.u32 %s38, 1
          %s133 = smul.addr %s132, 2048
          %s134 = scalar_lea.vmem [#allocation2], %s133
          %s135 = smul.u32 2, %s21
          %s136 = smul.u32 128, %s22
          %s138 = ssub.s32 32768, 32768
          %139 = vsyncadd %s131, %s138
          %s140 = smul.addr %s135, 128
          %s141 = sadd.s32 %s136, %s140
          %s142 = smul.addr %s141, 128
          %s143 = scalar_lea.hbm %s0, %s142
          %s144 = sshll.u32 %s134, 4
          %s145 = int_to_ptr.vmem [resolvable:$true] %s144
          %150 = dma.hbm_to_vmem [thread:$0]  %s143, 32768, %s145, %s131, 16384, 16384, 1024
        $region20: #{tpu_custom_call.1} parent=15 // pred_fallthru
          _
        // Predicated region
        $region21: #{tpu_custom_call.1} parent=15 // pred_check
          %p151 = pneg %p74
        $region22: #{tpu_custom_call.1} parent=15 // pred_check_branch
          %153 = sbr.rel (%p151) target = $region24
        $region23: #{tpu_custom_call.1} parent=15 // pred_region
          %s154 = smul.u32 2, %s21
          %p155 = scmp.lt.s32.totalorder %s154, 3
          %s156 = scalar_select %p155, %s154, 3
          %s157 = smul.addr %s156, 8
          %s158 = scalar_lea.vmem %s1, %s157
          %s159 = smul.u32 2, %s21
        $region24: #{tpu_custom_call.1} parent=15 // pred_fallthru
          _
      $region16: #{tpu_custom_call.1} parent=5 // pred_fallthru
        _
      %p160 = scmp.le.s32.totalorder 1, %s14
      %p161 = scmp.lt.s32.totalorder %s14, 3
      %p162 = pnand %p160, %p161
      %p163 = pneg %p162
      // Predicated region
      $region25: #{tpu_custom_call.1} parent=5 // pred_check
        _
      $region26: #{tpu_custom_call.1} parent=5 // pred_check_branch
        %165 = sbr.rel (%p162) target = $region28
      $region27: #{tpu_custom_call.1} parent=5 // pred_region
        %s166 = ssub.s32 %s14, 1
        %s167 = sand.u32 %s41, 1
        %s168 = scalar_lea.sflag [#allocation3], %s167
        %s169 = sand.u32 %s41, 1
        %s170 = smul.addr %s169, 2048
        %s171 = scalar_lea.vmem [#allocation2], %s170
        // Predicated region
        $region29: #{tpu_custom_call.1} parent=27 // pred_check
          %p172 = pneg %p54
        $region30: #{tpu_custom_call.1} parent=27 // pred_check_branch
          %174 = sbr.rel (%p172) target = $region32
        $region31: #{tpu_custom_call.1} parent=27 // pred_region
          %175 = dma.done %s168, 32768
        $region32: #{tpu_custom_call.1} parent=27 // pred_fallthru
          _
        %s176 = sand.u32 %s41, 1
        %s177 = scalar_lea.sflag [#allocation3], %s176
        %s178 = sand.u32 %s41, 1
        %s179 = smul.addr %s178, 2048
        %s180 = scalar_lea.vmem [#allocation2], %s179
        %p181 = pneg %p54
        %p182 = pneg %p51
        %s183 = smul.u32 2, %s23
        %p184 = scmp.lt.s32.totalorder %s183, 3
        %s185 = scalar_select %p184, %s183, 3
        %s186 = smul.addr %s185, 8
        %s187 = scalar_lea.vmem %s1, %s186
        %p188 = pneg %p80
        %p189 = pneg %p77
        %p190 = pneg %p108
        %p191 = pneg %p105
        %s192 = sand.u32 %s95, 1
        %s193 = scalar_lea.sflag [#allocation4], %s192
        %s194 = sand.u32 %s95, 1
        %s195 = smul.addr %s194, 2048
        %s196 = scalar_lea.vmem [#allocation5], %s195
        %s197 = smul.u32 2, %s23
        %s198 = smul.u32 128, %s24
        %s199 = smul.u32 2, %s23
        %p200 = scmp.lt.s32.totalorder %s199, 3
        %s201 = scalar_select %p200, %s199, 3
        %s202 = smul.addr %s201, 8
        %s203 = scalar_lea.vmem %s1, %s202
        %s204 = smul.u32 2, %s23
        %s205 = smul.u32 2, %s23
        %s206 = smul.u32 128, %s24
        %v207 = vld [vmem:[%s171] sm:$0xff]
        %v208 = vld [vmem:[%s171 + $0x8] sm:$0xff]
        %v209 = vld [vmem:[%s171 + $0x10] sm:$0xff]
        %v210 = vld [vmem:[%s171 + $0x18] sm:$0xff]
        %v211 = vld [vmem:[%s171 + $0x20] sm:$0xff]
        %v212 = vld [vmem:[%s171 + $0x28] sm:$0xff]
        %v213 = vld [vmem:[%s171 + $0x30] sm:$0xff]
        %v214 = vld [vmem:[%s171 + $0x38] sm:$0xff]
        %v215 = vld [vmem:[%s171 + $0x40] sm:$0xff]
        %v216 = vld [vmem:[%s171 + $0x48] sm:$0xff]
        %v217 = vld [vmem:[%s171 + $0x50] sm:$0xff]
        %v218 = vld [vmem:[%s171 + $0x58] sm:$0xff]
        %v219 = vld [vmem:[%s171 + $0x60] sm:$0xff]
        %v220 = vld [vmem:[%s171 + $0x68] sm:$0xff]
        %v221 = vld [vmem:[%s171 + $0x70] sm:$0xff]
        %v222 = vld [vmem:[%s171 + $0x78] sm:$0xff]
        %v223 = vld [vmem:[%s171 + $0x80] sm:$0xff]
        %v224 = vld [vmem:[%s171 + $0x88] sm:$0xff]
        %v225 = vld [vmem:[%s171 + $0x90] sm:$0xff]
        %v226 = vld [vmem:[%s171 + $0x98] sm:$0xff]
        %v227 = vld [vmem:[%s171 + $0xa0] sm:$0xff]
        %v228 = vld [vmem:[%s171 + $0xa8] sm:$0xff]
        %v229 = vld [vmem:[%s171 + $0xb0] sm:$0xff]
        %v230 = vld [vmem:[%s171 + $0xb8] sm:$0xff]
        %v231 = vld [vmem:[%s171 + $0xc0] sm:$0xff]
        %v232 = vld [vmem:[%s171 + $0xc8] sm:$0xff]
        %v233 = vld [vmem:[%s171 + $0xd0] sm:$0xff]
        %v234 = vld [vmem:[%s171 + $0xd8] sm:$0xff]
        %v235 = vld [vmem:[%s171 + $0xe0] sm:$0xff]
        %v236 = vld [vmem:[%s171 + $0xe8] sm:$0xff]
        %v237 = vld [vmem:[%s171 + $0xf0] sm:$0xff]
        %v238 = vld [vmem:[%s171 + $0xf8] sm:$0xff]
        %v239 = vld [vmem:[%s171 + $0x100] sm:$0xff]
        %v240 = vld [vmem:[%s171 + $0x108] sm:$0xff]
        %v241 = vld [vmem:[%s171 + $0x110] sm:$0xff]
        %v242 = vld [vmem:[%s171 + $0x118] sm:$0xff]
        %v243 = vld [vmem:[%s171 + $0x120] sm:$0xff]
        %v244 = vld [vmem:[%s171 + $0x128] sm:$0xff]
        %v245 = vld [vmem:[%s171 + $0x130] sm:$0xff]
        %v246 = vld [vmem:[%s171 + $0x138] sm:$0xff]
        %v247 = vld [vmem:[%s171 + $0x140] sm:$0xff]
        %v248 = vld [vmem:[%s171 + $0x148] sm:$0xff]
        %v249 = vld [vmem:[%s171 + $0x150] sm:$0xff]
        %v250 = vld [vmem:[%s171 + $0x158] sm:$0xff]
        %v251 = vld [vmem:[%s171 + $0x160] sm:$0xff]
        %v252 = vld [vmem:[%s171 + $0x168] sm:$0xff]
        %v253 = vld [vmem:[%s171 + $0x170] sm:$0xff]
        %v254 = vld [vmem:[%s171 + $0x178] sm:$0xff]
        %v255 = vld [vmem:[%s171 + $0x180] sm:$0xff]
        %v256 = vld [vmem:[%s171 + $0x188] sm:$0xff]
        %v257 = vld [vmem:[%s171 + $0x190] sm:$0xff]
        %v258 = vld [vmem:[%s171 + $0x198] sm:$0xff]
        %v259 = vld [vmem:[%s171 + $0x1a0] sm:$0xff]
        %v260 = vld [vmem:[%s171 + $0x1a8] sm:$0xff]
        %v261 = vld [vmem:[%s171 + $0x1b0] sm:$0xff]
        %v262 = vld [vmem:[%s171 + $0x1b8] sm:$0xff]
        %v263 = vld [vmem:[%s171 + $0x1c0] sm:$0xff]
        %v264 = vld [vmem:[%s171 + $0x1c8] sm:$0xff]
        %v265 = vld [vmem:[%s171 + $0x1d0] sm:$0xff]
        %v266 = vld [vmem:[%s171 + $0x1d8] sm:$0xff]
        %v267 = vld [vmem:[%s171 + $0x1e0] sm:$0xff]
        %v268 = vld [vmem:[%s171 + $0x1e8] sm:$0xff]
        %v269 = vld [vmem:[%s171 + $0x1f0] sm:$0xff]
        %v270 = vld [vmem:[%s171 + $0x1f8] sm:$0xff]
        %v271 = vld [vmem:[%s171 + $0x200] sm:$0xff]
        %v272 = vld [vmem:[%s171 + $0x208] sm:$0xff]
        %v273 = vld [vmem:[%s171 + $0x210] sm:$0xff]
        %v274 = vld [vmem:[%s171 + $0x218] sm:$0xff]
        %v275 = vld [vmem:[%s171 + $0x220] sm:$0xff]
        %v276 = vld [vmem:[%s171 + $0x228] sm:$0xff]
        %v277 = vld [vmem:[%s171 + $0x230] sm:$0xff]
        %v278 = vld [vmem:[%s171 + $0x238] sm:$0xff]
        %v279 = vld [vmem:[%s171 + $0x240] sm:$0xff]
        %v280 = vld [vmem:[%s171 + $0x248] sm:$0xff]
        %v281 = vld [vmem:[%s171 + $0x250] sm:$0xff]
        %v282 = vld [vmem:[%s171 + $0x258] sm:$0xff]
        %v283 = vld [vmem:[%s171 + $0x260] sm:$0xff]
        %v284 = vld [vmem:[%s171 + $0x268] sm:$0xff]
        %v285 = vld [vmem:[%s171 + $0x270] sm:$0xff]
        %v286 = vld [vmem:[%s171 + $0x278] sm:$0xff]
        %v287 = vld [vmem:[%s171 + $0x280] sm:$0xff]
        %v288 = vld [vmem:[%s171 + $0x288] sm:$0xff]
        %v289 = vld [vmem:[%s171 + $0x290] sm:$0xff]
        %v290 = vld [vmem:[%s171 + $0x298] sm:$0xff]
        %v291 = vld [vmem:[%s171 + $0x2a0] sm:$0xff]
        %v292 = vld [vmem:[%s171 + $0x2a8] sm:$0xff]
        %v293 = vld [vmem:[%s171 + $0x2b0] sm:$0xff]
        %v294 = vld [vmem:[%s171 + $0x2b8] sm:$0xff]
        %v295 = vld [vmem:[%s171 + $0x2c0] sm:$0xff]
        %v296 = vld [vmem:[%s171 + $0x2c8] sm:$0xff]
        %v297 = vld [vmem:[%s171 + $0x2d0] sm:$0xff]
        %v298 = vld [vmem:[%s171 + $0x2d8] sm:$0xff]
        %v299 = vld [vmem:[%s171 + $0x2e0] sm:$0xff]
        %v300 = vld [vmem:[%s171 + $0x2e8] sm:$0xff]
        %v301 = vld [vmem:[%s171 + $0x2f0] sm:$0xff]
        %v302 = vld [vmem:[%s171 + $0x2f8] sm:$0xff]
        %v303 = vld [vmem:[%s171 + $0x300] sm:$0xff]
        %v304 = vld [vmem:[%s171 + $0x308] sm:$0xff]
        %v305 = vld [vmem:[%s171 + $0x310] sm:$0xff]
        %v306 = vld [vmem:[%s171 + $0x318] sm:$0xff]
        %v307 = vld [vmem:[%s171 + $0x320] sm:$0xff]
        %v308 = vld [vmem:[%s171 + $0x328] sm:$0xff]
        %v309 = vld [vmem:[%s171 + $0x330] sm:$0xff]
        %v310 = vld [vmem:[%s171 + $0x338] sm:$0xff]
        %v311 = vld [vmem:[%s171 + $0x340] sm:$0xff]
        %v312 = vld [vmem:[%s171 + $0x348] sm:$0xff]
        %v313 = vld [vmem:[%s171 + $0x350] sm:$0xff]
        %v314 = vld [vmem:[%s171 + $0x358] sm:$0xff]
        %v315 = vld [vmem:[%s171 + $0x360] sm:$0xff]
        %v316 = vld [vmem:[%s171 + $0x368] sm:$0xff]
        %v317 = vld [vmem:[%s171 + $0x370] sm:$0xff]
        %v318 = vld [vmem:[%s171 + $0x378] sm:$0xff]
        %v319 = vld [vmem:[%s171 + $0x380] sm:$0xff]
        %v320 = vld [vmem:[%s171 + $0x388] sm:$0xff]
        %v321 = vld [vmem:[%s171 + $0x390] sm:$0xff]
        %v322 = vld [vmem:[%s171 + $0x398] sm:$0xff]
        %v323 = vld [vmem:[%s171 + $0x3a0] sm:$0xff]
        %v324 = vld [vmem:[%s171 + $0x3a8] sm:$0xff]
        %v325 = vld [vmem:[%s171 + $0x3b0] sm:$0xff]
        %v326 = vld [vmem:[%s171 + $0x3b8] sm:$0xff]
        %v327 = vld [vmem:[%s171 + $0x3c0] sm:$0xff]
        %v328 = vld [vmem:[%s171 + $0x3c8] sm:$0xff]
        %v329 = vld [vmem:[%s171 + $0x3d0] sm:$0xff]
        %v330 = vld [vmem:[%s171 + $0x3d8] sm:$0xff]
        %v331 = vld [vmem:[%s171 + $0x3e0] sm:$0xff]
        %v332 = vld [vmem:[%s171 + $0x3e8] sm:$0xff]
        %v333 = vld [vmem:[%s171 + $0x3f0] sm:$0xff]
        %v334 = vld [vmem:[%s171 + $0x3f8] sm:$0xff]
        %v335 = vld [vmem:[%s171 + $0x400] sm:$0xff]
        %v336 = vld [vmem:[%s171 + $0x408] sm:$0xff]
        %v337 = vld [vmem:[%s171 + $0x410] sm:$0xff]
        %v338 = vld [vmem:[%s171 + $0x418] sm:$0xff]
        %v339 = vld [vmem:[%s171 + $0x420] sm:$0xff]
        %v340 = vld [vmem:[%s171 + $0x428] sm:$0xff]
        %v341 = vld [vmem:[%s171 + $0x430] sm:$0xff]
        %v342 = vld [vmem:[%s171 + $0x438] sm:$0xff]
        %v343 = vld [vmem:[%s171 + $0x440] sm:$0xff]
        %v344 = vld [vmem:[%s171 + $0x448] sm:$0xff]
        %v345 = vld [vmem:[%s171 + $0x450] sm:$0xff]
        %v346 = vld [vmem:[%s171 + $0x458] sm:$0xff]
        %v347 = vld [vmem:[%s171 + $0x460] sm:$0xff]
        %v348 = vld [vmem:[%s171 + $0x468] sm:$0xff]
        %v349 = vld [vmem:[%s171 + $0x470] sm:$0xff]
        %v350 = vld [vmem:[%s171 + $0x478] sm:$0xff]
        %v351 = vld [vmem:[%s171 + $0x480] sm:$0xff]
        %v352 = vld [vmem:[%s171 + $0x488] sm:$0xff]
        %v353 = vld [vmem:[%s171 + $0x490] sm:$0xff]
        %v354 = vld [vmem:[%s171 + $0x498] sm:$0xff]
        %v355 = vld [vmem:[%s171 + $0x4a0] sm:$0xff]
        %v356 = vld [vmem:[%s171 + $0x4a8] sm:$0xff]
        %v357 = vld [vmem:[%s171 + $0x4b0] sm:$0xff]
        %v358 = vld [vmem:[%s171 + $0x4b8] sm:$0xff]
        %v359 = vld [vmem:[%s171 + $0x4c0] sm:$0xff]
        %v360 = vld [vmem:[%s171 + $0x4c8] sm:$0xff]
        %v361 = vld [vmem:[%s171 + $0x4d0] sm:$0xff]
        %v362 = vld [vmem:[%s171 + $0x4d8] sm:$0xff]
        %v363 = vld [vmem:[%s171 + $0x4e0] sm:$0xff]
        %v364 = vld [vmem:[%s171 + $0x4e8] sm:$0xff]
        %v365 = vld [vmem:[%s171 + $0x4f0] sm:$0xff]
        %v366 = vld [vmem:[%s171 + $0x4f8] sm:$0xff]
        %v367 = vld [vmem:[%s171 + $0x500] sm:$0xff]
        %v368 = vld [vmem:[%s171 + $0x508] sm:$0xff]
        %v369 = vld [vmem:[%s171 + $0x510] sm:$0xff]
        %v370 = vld [vmem:[%s171 + $0x518] sm:$0xff]
        %v371 = vld [vmem:[%s171 + $0x520] sm:$0xff]
        %v372 = vld [vmem:[%s171 + $0x528] sm:$0xff]
        %v373 = vld [vmem:[%s171 + $0x530] sm:$0xff]
        %v374 = vld [vmem:[%s171 + $0x538] sm:$0xff]
        %v375 = vld [vmem:[%s171 + $0x540] sm:$0xff]
        %v376 = vld [vmem:[%s171 + $0x548] sm:$0xff]
        %v377 = vld [vmem:[%s171 + $0x550] sm:$0xff]
        %v378 = vld [vmem:[%s171 + $0x558] sm:$0xff]
        %v379 = vld [vmem:[%s171 + $0x560] sm:$0xff]
        %v380 = vld [vmem:[%s171 + $0x568] sm:$0xff]
        %v381 = vld [vmem:[%s171 + $0x570] sm:$0xff]
        %v382 = vld [vmem:[%s171 + $0x578] sm:$0xff]
        %v383 = vld [vmem:[%s171 + $0x580] sm:$0xff]
        %v384 = vld [vmem:[%s171 + $0x588] sm:$0xff]
        %v385 = vld [vmem:[%s171 + $0x590] sm:$0xff]
        %v386 = vld [vmem:[%s171 + $0x598] sm:$0xff]
        %v387 = vld [vmem:[%s171 + $0x5a0] sm:$0xff]
        %v388 = vld [vmem:[%s171 + $0x5a8] sm:$0xff]
        %v389 = vld [vmem:[%s171 + $0x5b0] sm:$0xff]
        %v390 = vld [vmem:[%s171 + $0x5b8] sm:$0xff]
        %v391 = vld [vmem:[%s171 + $0x5c0] sm:$0xff]
        %v392 = vld [vmem:[%s171 + $0x5c8] sm:$0xff]
        %v393 = vld [vmem:[%s171 + $0x5d0] sm:$0xff]
        %v394 = vld [vmem:[%s171 + $0x5d8] sm:$0xff]
        %v395 = vld [vmem:[%s171 + $0x5e0] sm:$0xff]
        %v396 = vld [vmem:[%s171 + $0x5e8] sm:$0xff]
        %v397 = vld [vmem:[%s171 + $0x5f0] sm:$0xff]
        %v398 = vld [vmem:[%s171 + $0x5f8] sm:$0xff]
        %v399 = vld [vmem:[%s171 + $0x600] sm:$0xff]
        %v400 = vld [vmem:[%s171 + $0x608] sm:$0xff]
        %v401 = vld [vmem:[%s171 + $0x610] sm:$0xff]
        %v402 = vld [vmem:[%s171 + $0x618] sm:$0xff]
        %v403 = vld [vmem:[%s171 + $0x620] sm:$0xff]
        %v404 = vld [vmem:[%s171 + $0x628] sm:$0xff]
        %v405 = vld [vmem:[%s171 + $0x630] sm:$0xff]
        %v406 = vld [vmem:[%s171 + $0x638] sm:$0xff]
        %v407 = vld [vmem:[%s171 + $0x640] sm:$0xff]
        %v408 = vld [vmem:[%s171 + $0x648] sm:$0xff]
        %v409 = vld [vmem:[%s171 + $0x650] sm:$0xff]
        %v410 = vld [vmem:[%s171 + $0x658] sm:$0xff]
        %v411 = vld [vmem:[%s171 + $0x660] sm:$0xff]
        %v412 = vld [vmem:[%s171 + $0x668] sm:$0xff]
        %v413 = vld [vmem:[%s171 + $0x670] sm:$0xff]
        %v414 = vld [vmem:[%s171 + $0x678] sm:$0xff]
        %v415 = vld [vmem:[%s171 + $0x680] sm:$0xff]
        %v416 = vld [vmem:[%s171 + $0x688] sm:$0xff]
        %v417 = vld [vmem:[%s171 + $0x690] sm:$0xff]
        %v418 = vld [vmem:[%s171 + $0x698] sm:$0xff]
        %v419 = vld [vmem:[%s171 + $0x6a0] sm:$0xff]
        %v420 = vld [vmem:[%s171 + $0x6a8] sm:$0xff]
        %v421 = vld [vmem:[%s171 + $0x6b0] sm:$0xff]
        %v422 = vld [vmem:[%s171 + $0x6b8] sm:$0xff]
        %v423 = vld [vmem:[%s171 + $0x6c0] sm:$0xff]
        %v424 = vld [vmem:[%s171 + $0x6c8] sm:$0xff]
        %v425 = vld [vmem:[%s171 + $0x6d0] sm:$0xff]
        %v426 = vld [vmem:[%s171 + $0x6d8] sm:$0xff]
        %v427 = vld [vmem:[%s171 + $0x6e0] sm:$0xff]
        %v428 = vld [vmem:[%s171 + $0x6e8] sm:$0xff]
        %v429 = vld [vmem:[%s171 + $0x6f0] sm:$0xff]
        %v430 = vld [vmem:[%s171 + $0x6f8] sm:$0xff]
        %v431 = vld [vmem:[%s171 + $0x700] sm:$0xff]
        %v432 = vld [vmem:[%s171 + $0x708] sm:$0xff]
        %v433 = vld [vmem:[%s171 + $0x710] sm:$0xff]
        %v434 = vld [vmem:[%s171 + $0x718] sm:$0xff]
        %v435 = vld [vmem:[%s171 + $0x720] sm:$0xff]
        %v436 = vld [vmem:[%s171 + $0x728] sm:$0xff]
        %v437 = vld [vmem:[%s171 + $0x730] sm:$0xff]
        %v438 = vld [vmem:[%s171 + $0x738] sm:$0xff]
        %v439 = vld [vmem:[%s171 + $0x740] sm:$0xff]
        %v440 = vld [vmem:[%s171 + $0x748] sm:$0xff]
        %v441 = vld [vmem:[%s171 + $0x750] sm:$0xff]
        %v442 = vld [vmem:[%s171 + $0x758] sm:$0xff]
        %v443 = vld [vmem:[%s171 + $0x760] sm:$0xff]
        %v444 = vld [vmem:[%s171 + $0x768] sm:$0xff]
        %v445 = vld [vmem:[%s171 + $0x770] sm:$0xff]
        %v446 = vld [vmem:[%s171 + $0x778] sm:$0xff]
        %v447 = vld [vmem:[%s171 + $0x780] sm:$0xff]
        %v448 = vld [vmem:[%s171 + $0x788] sm:$0xff]
        %v449 = vld [vmem:[%s171 + $0x790] sm:$0xff]
        %v450 = vld [vmem:[%s171 + $0x798] sm:$0xff]
        %v451 = vld [vmem:[%s171 + $0x7a0] sm:$0xff]
        %v452 = vld [vmem:[%s171 + $0x7a8] sm:$0xff]
        %v453 = vld [vmem:[%s171 + $0x7b0] sm:$0xff]
        %v454 = vld [vmem:[%s171 + $0x7b8] sm:$0xff]
        %v455 = vld [vmem:[%s171 + $0x7c0] sm:$0xff]
        %v456 = vld [vmem:[%s171 + $0x7c8] sm:$0xff]
        %v457 = vld [vmem:[%s171 + $0x7d0] sm:$0xff]
        %v458 = vld [vmem:[%s171 + $0x7d8] sm:$0xff]
        %v459 = vld [vmem:[%s171 + $0x7e0] sm:$0xff]
        %v460 = vld [vmem:[%s171 + $0x7e8] sm:$0xff]
        %v461 = vld [vmem:[%s171 + $0x7f0] sm:$0xff]
        %v462 = vld [vmem:[%s171 + $0x7f8] sm:$0xff]
        %v463 = vld [vmem:[%s203] sm:$0xff]
        %v464 = vld [vmem:[%s203 + $0x8] sm:$0xff]
        %466 = vset.pattern.permute.xlu0 0
        %467 = vperm.xlu0 %466, %v463
        %v468 = vpop.permute.xlu0 %467
        %471 = vset.pattern.permute.xlu0 0
        %472 = vperm.xlu0 %471, %v464
        %v473 = vpop.permute.xlu0 %472
        %v475 = vmul.f32 %v207, %v468
        %v476 = vmul.f32 %v208, %v468
        %v477 = vmul.f32 %v209, %v468
        %v478 = vmul.f32 %v210, %v468
        %v479 = vmul.f32 %v211, %v468
        %v480 = vmul.f32 %v212, %v468
        %v481 = vmul.f32 %v213, %v468
        %v482 = vmul.f32 %v214, %v468
        %v483 = vmul.f32 %v215, %v468
        %v484 = vmul.f32 %v216, %v468
        %v485 = vmul.f32 %v217, %v468
        %v486 = vmul.f32 %v218, %v468
        %v487 = vmul.f32 %v219, %v468
        %v488 = vmul.f32 %v220, %v468
        %v489 = vmul.f32 %v221, %v468
        %v490 = vmul.f32 %v222, %v468
        %v491 = vmul.f32 %v223, %v468
        %v492 = vmul.f32 %v224, %v468
        %v493 = vmul.f32 %v225, %v468
        %v494 = vmul.f32 %v226, %v468
        %v495 = vmul.f32 %v227, %v468
        %v496 = vmul.f32 %v228, %v468
        %v497 = vmul.f32 %v229, %v468
        %v498 = vmul.f32 %v230, %v468
        %v499 = vmul.f32 %v231, %v468
        %v500 = vmul.f32 %v232, %v468
        %v501 = vmul.f32 %v233, %v468
        %v502 = vmul.f32 %v234, %v468
        %v503 = vmul.f32 %v235, %v468
        %v504 = vmul.f32 %v236, %v468
        %v505 = vmul.f32 %v237, %v468
        %v506 = vmul.f32 %v238, %v468
        %v507 = vmul.f32 %v239, %v468
        %v508 = vmul.f32 %v240, %v468
        %v509 = vmul.f32 %v241, %v468
        %v510 = vmul.f32 %v242, %v468
        %v511 = vmul.f32 %v243, %v468
        %v512 = vmul.f32 %v244, %v468
        %v513 = vmul.f32 %v245, %v468
        %v514 = vmul.f32 %v246, %v468
        %v515 = vmul.f32 %v247, %v468
        %v516 = vmul.f32 %v248, %v468
        %v517 = vmul.f32 %v249, %v468
        %v518 = vmul.f32 %v250, %v468
        %v519 = vmul.f32 %v251, %v468
        %v520 = vmul.f32 %v252, %v468
        %v521 = vmul.f32 %v253, %v468
        %v522 = vmul.f32 %v254, %v468
        %v523 = vmul.f32 %v255, %v468
        %v524 = vmul.f32 %v256, %v468
        %v525 = vmul.f32 %v257, %v468
        %v526 = vmul.f32 %v258, %v468
        %v527 = vmul.f32 %v259, %v468
        %v528 = vmul.f32 %v260, %v468
        %v529 = vmul.f32 %v261, %v468
        %v530 = vmul.f32 %v262, %v468
        %v531 = vmul.f32 %v263, %v468
        %v532 = vmul.f32 %v264, %v468
        %v533 = vmul.f32 %v265, %v468
        %v534 = vmul.f32 %v266, %v468
        %v535 = vmul.f32 %v267, %v468
        %v536 = vmul.f32 %v268, %v468
        %v537 = vmul.f32 %v269, %v468
        %v538 = vmul.f32 %v270, %v468
        %v539 = vmul.f32 %v271, %v468
        %v540 = vmul.f32 %v272, %v468
        %v541 = vmul.f32 %v273, %v468
        %v542 = vmul.f32 %v274, %v468
        %v543 = vmul.f32 %v275, %v468
        %v544 = vmul.f32 %v276, %v468
        %v545 = vmul.f32 %v277, %v468
        %v546 = vmul.f32 %v278, %v468
        %v547 = vmul.f32 %v279, %v468
        %v548 = vmul.f32 %v280, %v468
        %v549 = vmul.f32 %v281, %v468
        %v550 = vmul.f32 %v282, %v468
        %v551 = vmul.f32 %v283, %v468
        %v552 = vmul.f32 %v284, %v468
        %v553 = vmul.f32 %v285, %v468
        %v554 = vmul.f32 %v286, %v468
        %v555 = vmul.f32 %v287, %v468
        %v556 = vmul.f32 %v288, %v468
        %v557 = vmul.f32 %v289, %v468
        %v558 = vmul.f32 %v290, %v468
        %v559 = vmul.f32 %v291, %v468
        %v560 = vmul.f32 %v292, %v468
        %v561 = vmul.f32 %v293, %v468
        %v562 = vmul.f32 %v294, %v468
        %v563 = vmul.f32 %v295, %v468
        %v564 = vmul.f32 %v296, %v468
        %v565 = vmul.f32 %v297, %v468
        %v566 = vmul.f32 %v298, %v468
        %v567 = vmul.f32 %v299, %v468
        %v568 = vmul.f32 %v300, %v468
        %v569 = vmul.f32 %v301, %v468
        %v570 = vmul.f32 %v302, %v468
        %v571 = vmul.f32 %v303, %v468
        %v572 = vmul.f32 %v304, %v468
        %v573 = vmul.f32 %v305, %v468
        %v574 = vmul.f32 %v306, %v468
        %v575 = vmul.f32 %v307, %v468
        %v576 = vmul.f32 %v308, %v468
        %v577 = vmul.f32 %v309, %v468
        %v578 = vmul.f32 %v310, %v468
        %v579 = vmul.f32 %v311, %v468
        %v580 = vmul.f32 %v312, %v468
        %v581 = vmul.f32 %v313, %v468
        %v582 = vmul.f32 %v314, %v468
        %v583 = vmul.f32 %v315, %v468
        %v584 = vmul.f32 %v316, %v468
        %v585 = vmul.f32 %v317, %v468
        %v586 = vmul.f32 %v318, %v468
        %v587 = vmul.f32 %v319, %v468
        %v588 = vmul.f32 %v320, %v468
        %v589 = vmul.f32 %v321, %v468
        %v590 = vmul.f32 %v322, %v468
        %v591 = vmul.f32 %v323, %v468
        %v592 = vmul.f32 %v324, %v468
        %v593 = vmul.f32 %v325, %v468
        %v594 = vmul.f32 %v326, %v468
        %v595 = vmul.f32 %v327, %v468
        %v596 = vmul.f32 %v328, %v468
        %v597 = vmul.f32 %v329, %v468
        %v598 = vmul.f32 %v330, %v468
        %v599 = vmul.f32 %v331, %v468
        %v600 = vmul.f32 %v332, %v468
        %v601 = vmul.f32 %v333, %v468
        %v602 = vmul.f32 %v334, %v468
        %v603 = vmul.f32 %v335, %v473
        %v604 = vmul.f32 %v336, %v473
        %v605 = vmul.f32 %v337, %v473
        %v606 = vmul.f32 %v338, %v473
        %v607 = vmul.f32 %v339, %v473
        %v608 = vmul.f32 %v340, %v473
        %v609 = vmul.f32 %v341, %v473
        %v610 = vmul.f32 %v342, %v473
        %v611 = vmul.f32 %v343, %v473
        %v612 = vmul.f32 %v344, %v473
        %v613 = vmul.f32 %v345, %v473
        %v614 = vmul.f32 %v346, %v473
        %v615 = vmul.f32 %v347, %v473
        %v616 = vmul.f32 %v348, %v473
        %v617 = vmul.f32 %v349, %v473
        %v618 = vmul.f32 %v350, %v473
        %v619 = vmul.f32 %v351, %v473
        %v620 = vmul.f32 %v352, %v473
        %v621 = vmul.f32 %v353, %v473
        %v622 = vmul.f32 %v354, %v473
        %v623 = vmul.f32 %v355, %v473
        %v624 = vmul.f32 %v356, %v473
        %v625 = vmul.f32 %v357, %v473
        %v626 = vmul.f32 %v358, %v473
        %v627 = vmul.f32 %v359, %v473
        %v628 = vmul.f32 %v360, %v473
        %v629 = vmul.f32 %v361, %v473
        %v630 = vmul.f32 %v362, %v473
        %v631 = vmul.f32 %v363, %v473
        %v632 = vmul.f32 %v364, %v473
        %v633 = vmul.f32 %v365, %v473
        %v634 = vmul.f32 %v366, %v473
        %v635 = vmul.f32 %v367, %v473
        %v636 = vmul.f32 %v368, %v473
        %v637 = vmul.f32 %v369, %v473
        %v638 = vmul.f32 %v370, %v473
        %v639 = vmul.f32 %v371, %v473
        %v640 = vmul.f32 %v372, %v473
        %v641 = vmul.f32 %v373, %v473
        %v642 = vmul.f32 %v374, %v473
        %v643 = vmul.f32 %v375, %v473
        %v644 = vmul.f32 %v376, %v473
        %v645 = vmul.f32 %v377, %v473
        %v646 = vmul.f32 %v378, %v473
        %v647 = vmul.f32 %v379, %v473
        %v648 = vmul.f32 %v380, %v473
        %v649 = vmul.f32 %v381, %v473
        %v650 = vmul.f32 %v382, %v473
        %v651 = vmul.f32 %v383, %v473
        %v652 = vmul.f32 %v384, %v473
        %v653 = vmul.f32 %v385, %v473
        %v654 = vmul.f32 %v386, %v473
        %v655 = vmul.f32 %v387, %v473
        %v656 = vmul.f32 %v388, %v473
        %v657 = vmul.f32 %v389, %v473
        %v658 = vmul.f32 %v390, %v473
        %v659 = vmul.f32 %v391, %v473
        %v660 = vmul.f32 %v392, %v473
        %v661 = vmul.f32 %v393, %v473
        %v662 = vmul.f32 %v394, %v473
        %v663 = vmul.f32 %v395, %v473
        %v664 = vmul.f32 %v396, %v473
        %v665 = vmul.f32 %v397, %v473
        %v666 = vmul.f32 %v398, %v473
        %v667 = vmul.f32 %v399, %v473
        %v668 = vmul.f32 %v400, %v473
        %v669 = vmul.f32 %v401, %v473
        %v670 = vmul.f32 %v402, %v473
        %v671 = vmul.f32 %v403, %v473
        %v672 = vmul.f32 %v404, %v473
        %v673 = vmul.f32 %v405, %v473
        %v674 = vmul.f32 %v406, %v473
        %v675 = vmul.f32 %v407, %v473
        %v676 = vmul.f32 %v408, %v473
        %v677 = vmul.f32 %v409, %v473
        %v678 = vmul.f32 %v410, %v473
        %v679 = vmul.f32 %v411, %v473
        %v680 = vmul.f32 %v412, %v473
        %v681 = vmul.f32 %v413, %v473
        %v682 = vmul.f32 %v414, %v473
        %v683 = vmul.f32 %v415, %v473
        %v684 = vmul.f32 %v416, %v473
        %v685 = vmul.f32 %v417, %v473
        %v686 = vmul.f32 %v418, %v473
        %v687 = vmul.f32 %v419, %v473
        %v688 = vmul.f32 %v420, %v473
        %v689 = vmul.f32 %v421, %v473
        %v690 = vmul.f32 %v422, %v473
        %v691 = vmul.f32 %v423, %v473
        %v692 = vmul.f32 %v424, %v473
        %v693 = vmul.f32 %v425, %v473
        %v694 = vmul.f32 %v426, %v473
        %v695 = vmul.f32 %v427, %v473
        %v696 = vmul.f32 %v428, %v473
        %v697 = vmul.f32 %v429, %v473
        %v698 = vmul.f32 %v430, %v473
        %v699 = vmul.f32 %v431, %v473
        %v700 = vmul.f32 %v432, %v473
        %v701 = vmul.f32 %v433, %v473
        %v702 = vmul.f32 %v434, %v473
        %v703 = vmul.f32 %v435, %v473
        %v704 = vmul.f32 %v436, %v473
        %v705 = vmul.f32 %v437, %v473
        %v706 = vmul.f32 %v438, %v473
        %v707 = vmul.f32 %v439, %v473
        %v708 = vmul.f32 %v440, %v473
        %v709 = vmul.f32 %v441, %v473
        %v710 = vmul.f32 %v442, %v473
        %v711 = vmul.f32 %v443, %v473
        %v712 = vmul.f32 %v444, %v473
        %v713 = vmul.f32 %v445, %v473
        %v714 = vmul.f32 %v446, %v473
        %v715 = vmul.f32 %v447, %v473
        %v716 = vmul.f32 %v448, %v473
        %v717 = vmul.f32 %v449, %v473
        %v718 = vmul.f32 %v450, %v473
        %v719 = vmul.f32 %v451, %v473
        %v720 = vmul.f32 %v452, %v473
        %v721 = vmul.f32 %v453, %v473
        %v722 = vmul.f32 %v454, %v473
        %v723 = vmul.f32 %v455, %v473
        %v724 = vmul.f32 %v456, %v473
        %v725 = vmul.f32 %v457, %v473
        %v726 = vmul.f32 %v458, %v473
        %v727 = vmul.f32 %v459, %v473
        %v728 = vmul.f32 %v460, %v473
        %v729 = vmul.f32 %v461, %v473
        %v730 = vmul.f32 %v462, %v473
        %731 = vset.pattern.permute.xlu0 1
        %732 = vperm.xlu0 %731, %v463
        %v733 = vpop.permute.xlu0 %732
        %735 = vset.pattern.permute.xlu0 1
        %736 = vperm.xlu0 %735, %v464
        %v737 = vpop.permute.xlu0 %736
        %v739 = vadd.f32 %v475, %v733
        %v740 = vadd.f32 %v476, %v733
        %v741 = vadd.f32 %v477, %v733
        %v742 = vadd.f32 %v478, %v733
        %v743 = vadd.f32 %v479, %v733
        %v744 = vadd.f32 %v480, %v733
        %v745 = vadd.f32 %v481, %v733
        %v746 = vadd.f32 %v482, %v733
        %v747 = vadd.f32 %v483, %v733
        %v748 = vadd.f32 %v484, %v733
        %v749 = vadd.f32 %v485, %v733
        %v750 = vadd.f32 %v486, %v733
        %v751 = vadd.f32 %v487, %v733
        %v752 = vadd.f32 %v488, %v733
        %v753 = vadd.f32 %v489, %v733
        %v754 = vadd.f32 %v490, %v733
        %v755 = vadd.f32 %v491, %v733
        %v756 = vadd.f32 %v492, %v733
        %v757 = vadd.f32 %v493, %v733
        %v758 = vadd.f32 %v494, %v733
        %v759 = vadd.f32 %v495, %v733
        %v760 = vadd.f32 %v496, %v733
        %v761 = vadd.f32 %v497, %v733
        %v762 = vadd.f32 %v498, %v733
        %v763 = vadd.f32 %v499, %v733
        %v764 = vadd.f32 %v500, %v733
        %v765 = vadd.f32 %v501, %v733
        %v766 = vadd.f32 %v502, %v733
        %v767 = vadd.f32 %v503, %v733
        %v768 = vadd.f32 %v504, %v733
        %v769 = vadd.f32 %v505, %v733
        %v770 = vadd.f32 %v506, %v733
        %v771 = vadd.f32 %v507, %v733
        %v772 = vadd.f32 %v508, %v733
        %v773 = vadd.f32 %v509, %v733
        %v774 = vadd.f32 %v510, %v733
        %v775 = vadd.f32 %v511, %v733
        %v776 = vadd.f32 %v512, %v733
        %v777 = vadd.f32 %v513, %v733
        %v778 = vadd.f32 %v514, %v733
        %v779 = vadd.f32 %v515, %v733
        %v780 = vadd.f32 %v516, %v733
        %v781 = vadd.f32 %v517, %v733
        %v782 = vadd.f32 %v518, %v733
        %v783 = vadd.f32 %v519, %v733
        %v784 = vadd.f32 %v520, %v733
        %v785 = vadd.f32 %v521, %v733
        %v786 = vadd.f32 %v522, %v733
        %v787 = vadd.f32 %v523, %v733
        %v788 = vadd.f32 %v524, %v733
        %v789 = vadd.f32 %v525, %v733
        %v790 = vadd.f32 %v526, %v733
        %v791 = vadd.f32 %v527, %v733
        %v792 = vadd.f32 %v528, %v733
        %v793 = vadd.f32 %v529, %v733
        %v794 = vadd.f32 %v530, %v733
        %v795 = vadd.f32 %v531, %v733
        %v796 = vadd.f32 %v532, %v733
        %v797 = vadd.f32 %v533, %v733
        %v798 = vadd.f32 %v534, %v733
        %v799 = vadd.f32 %v535, %v733
        %v800 = vadd.f32 %v536, %v733
        %v801 = vadd.f32 %v537, %v733
        %v802 = vadd.f32 %v538, %v733
        %v803 = vadd.f32 %v539, %v733
        %v804 = vadd.f32 %v540, %v733
        %v805 = vadd.f32 %v541, %v733
        %v806 = vadd.f32 %v542, %v733
        %v807 = vadd.f32 %v543, %v733
        %v808 = vadd.f32 %v544, %v733
        %v809 = vadd.f32 %v545, %v733
        %v810 = vadd.f32 %v546, %v733
        %v811 = vadd.f32 %v547, %v733
        %v812 = vadd.f32 %v548, %v733
        %v813 = vadd.f32 %v549, %v733
        %v814 = vadd.f32 %v550, %v733
        %v815 = vadd.f32 %v551, %v733
        %v816 = vadd.f32 %v552, %v733
        %v817 = vadd.f32 %v553, %v733
        %v818 = vadd.f32 %v554, %v733
        %v819 = vadd.f32 %v555, %v733
        %v820 = vadd.f32 %v556, %v733
        %v821 = vadd.f32 %v557, %v733
        %v822 = vadd.f32 %v558, %v733
        %v823 = vadd.f32 %v559, %v733
        %v824 = vadd.f32 %v560, %v733
        %v825 = vadd.f32 %v561, %v733
        %v826 = vadd.f32 %v562, %v733
        %v827 = vadd.f32 %v563, %v733
        %v828 = vadd.f32 %v564, %v733
        %v829 = vadd.f32 %v565, %v733
        %v830 = vadd.f32 %v566, %v733
        %v831 = vadd.f32 %v567, %v733
        %v832 = vadd.f32 %v568, %v733
        %v833 = vadd.f32 %v569, %v733
        %v834 = vadd.f32 %v570, %v733
        %v835 = vadd.f32 %v571, %v733
        %v836 = vadd.f32 %v572, %v733
        %v837 = vadd.f32 %v573, %v733
        %v838 = vadd.f32 %v574, %v733
        %v839 = vadd.f32 %v575, %v733
        %v840 = vadd.f32 %v576, %v733
        %v841 = vadd.f32 %v577, %v733
        %v842 = vadd.f32 %v578, %v733
        %v843 = vadd.f32 %v579, %v733
        %v844 = vadd.f32 %v580, %v733
        %v845 = vadd.f32 %v581, %v733
        %v846 = vadd.f32 %v582, %v733
        %v847 = vadd.f32 %v583, %v733
        %v848 = vadd.f32 %v584, %v733
        %v849 = vadd.f32 %v585, %v733
        %v850 = vadd.f32 %v586, %v733
        %v851 = vadd.f32 %v587, %v733
        %v852 = vadd.f32 %v588, %v733
        %v853 = vadd.f32 %v589, %v733
        %v854 = vadd.f32 %v590, %v733
        %v855 = vadd.f32 %v591, %v733
        %v856 = vadd.f32 %v592, %v733
        %v857 = vadd.f32 %v593, %v733
        %v858 = vadd.f32 %v594, %v733
        %v859 = vadd.f32 %v595, %v733
        %v860 = vadd.f32 %v596, %v733
        %v861 = vadd.f32 %v597, %v733
        %v862 = vadd.f32 %v598, %v733
        %v863 = vadd.f32 %v599, %v733
        %v864 = vadd.f32 %v600, %v733
        %v865 = vadd.f32 %v601, %v733
        %v866 = vadd.f32 %v602, %v733
        %v867 = vadd.f32 %v603, %v737
        %v868 = vadd.f32 %v604, %v737
        %v869 = vadd.f32 %v605, %v737
        %v870 = vadd.f32 %v606, %v737
        %v871 = vadd.f32 %v607, %v737
        %v872 = vadd.f32 %v608, %v737
        %v873 = vadd.f32 %v609, %v737
        %v874 = vadd.f32 %v610, %v737
        %v875 = vadd.f32 %v611, %v737
        %v876 = vadd.f32 %v612, %v737
        %v877 = vadd.f32 %v613, %v737
        %v878 = vadd.f32 %v614, %v737
        %v879 = vadd.f32 %v615, %v737
        %v880 = vadd.f32 %v616, %v737
        %v881 = vadd.f32 %v617, %v737
        %v882 = vadd.f32 %v618, %v737
        %v883 = vadd.f32 %v619, %v737
        %v884 = vadd.f32 %v620, %v737
        %v885 = vadd.f32 %v621, %v737
        %v886 = vadd.f32 %v622, %v737
        %v887 = vadd.f32 %v623, %v737
        %v888 = vadd.f32 %v624, %v737
        %v889 = vadd.f32 %v625, %v737
        %v890 = vadd.f32 %v626, %v737
        %v891 = vadd.f32 %v627, %v737
        %v892 = vadd.f32 %v628, %v737
        %v893 = vadd.f32 %v629, %v737
        %v894 = vadd.f32 %v630, %v737
        %v895 = vadd.f32 %v631, %v737
        %v896 = vadd.f32 %v632, %v737
        %v897 = vadd.f32 %v633, %v737
        %v898 = vadd.f32 %v634, %v737
        %v899 = vadd.f32 %v635, %v737
        %v900 = vadd.f32 %v636, %v737
        %v901 = vadd.f32 %v637, %v737
        %v902 = vadd.f32 %v638, %v737
        %v903 = vadd.f32 %v639, %v737
        %v904 = vadd.f32 %v640, %v737
        %v905 = vadd.f32 %v641, %v737
        %v906 = vadd.f32 %v642, %v737
        %v907 = vadd.f32 %v643, %v737
        %v908 = vadd.f32 %v644, %v737
        %v909 = vadd.f32 %v645, %v737
        %v910 = vadd.f32 %v646, %v737
        %v911 = vadd.f32 %v647, %v737
        %v912 = vadd.f32 %v648, %v737
        %v913 = vadd.f32 %v649, %v737
        %v914 = vadd.f32 %v650, %v737
        %v915 = vadd.f32 %v651, %v737
        %v916 = vadd.f32 %v652, %v737
        %v917 = vadd.f32 %v653, %v737
        %v918 = vadd.f32 %v654, %v737
        %v919 = vadd.f32 %v655, %v737
        %v920 = vadd.f32 %v656, %v737
        %v921 = vadd.f32 %v657, %v737
        %v922 = vadd.f32 %v658, %v737
        %v923 = vadd.f32 %v659, %v737
        %v924 = vadd.f32 %v660, %v737
        %v925 = vadd.f32 %v661, %v737
        %v926 = vadd.f32 %v662, %v737
        %v927 = vadd.f32 %v663, %v737
        %v928 = vadd.f32 %v664, %v737
        %v929 = vadd.f32 %v665, %v737
        %v930 = vadd.f32 %v666, %v737
        %v931 = vadd.f32 %v667, %v737
        %v932 = vadd.f32 %v668, %v737
        %v933 = vadd.f32 %v669, %v737
        %v934 = vadd.f32 %v670, %v737
        %v935 = vadd.f32 %v671, %v737
        %v936 = vadd.f32 %v672, %v737
        %v937 = vadd.f32 %v673, %v737
        %v938 = vadd.f32 %v674, %v737
        %v939 = vadd.f32 %v675, %v737
        %v940 = vadd.f32 %v676, %v737
        %v941 = vadd.f32 %v677, %v737
        %v942 = vadd.f32 %v678, %v737
        %v943 = vadd.f32 %v679, %v737
        %v944 = vadd.f32 %v680, %v737
        %v945 = vadd.f32 %v681, %v737
        %v946 = vadd.f32 %v682, %v737
        %v947 = vadd.f32 %v683, %v737
        %v948 = vadd.f32 %v684, %v737
        %v949 = vadd.f32 %v685, %v737
        %v950 = vadd.f32 %v686, %v737
        %v951 = vadd.f32 %v687, %v737
        %v952 = vadd.f32 %v688, %v737
        %v953 = vadd.f32 %v689, %v737
        %v954 = vadd.f32 %v690, %v737
        %v955 = vadd.f32 %v691, %v737
        %v956 = vadd.f32 %v692, %v737
        %v957 = vadd.f32 %v693, %v737
        %v958 = vadd.f32 %v694, %v737
        %v959 = vadd.f32 %v695, %v737
        %v960 = vadd.f32 %v696, %v737
        %v961 = vadd.f32 %v697, %v737
        %v962 = vadd.f32 %v698, %v737
        %v963 = vadd.f32 %v699, %v737
        %v964 = vadd.f32 %v700, %v737
        %v965 = vadd.f32 %v701, %v737
        %v966 = vadd.f32 %v702, %v737
        %v967 = vadd.f32 %v703, %v737
        %v968 = vadd.f32 %v704, %v737
        %v969 = vadd.f32 %v705, %v737
        %v970 = vadd.f32 %v706, %v737
        %v971 = vadd.f32 %v707, %v737
        %v972 = vadd.f32 %v708, %v737
        %v973 = vadd.f32 %v709, %v737
        %v974 = vadd.f32 %v710, %v737
        %v975 = vadd.f32 %v711, %v737
        %v976 = vadd.f32 %v712, %v737
        %v977 = vadd.f32 %v713, %v737
        %v978 = vadd.f32 %v714, %v737
        %v979 = vadd.f32 %v715, %v737
        %v980 = vadd.f32 %v716, %v737
        %v981 = vadd.f32 %v717, %v737
        %v982 = vadd.f32 %v718, %v737
        %v983 = vadd.f32 %v719, %v737
        %v984 = vadd.f32 %v720, %v737
        %v985 = vadd.f32 %v721, %v737
        %v986 = vadd.f32 %v722, %v737
        %v987 = vadd.f32 %v723, %v737
        %v988 = vadd.f32 %v724, %v737
        %v989 = vadd.f32 %v725, %v737
        %v990 = vadd.f32 %v726, %v737
        %v991 = vadd.f32 %v727, %v737
        %v992 = vadd.f32 %v728, %v737
        %v993 = vadd.f32 %v729, %v737
        %v994 = vadd.f32 %v730, %v737
        %995 = vst [vmem:[%s196] sm:$0xff] %v739
        %996 = vst [vmem:[%s196 + $0x8] sm:$0xff] %v740
        %997 = vst [vmem:[%s196 + $0x10] sm:$0xff] %v741
        %998 = vst [vmem:[%s196 + $0x18] sm:$0xff] %v742
        %999 = vst [vmem:[%s196 + $0x20] sm:$0xff] %v743
        %1000 = vst [vmem:[%s196 + $0x28] sm:$0xff] %v744
        %1001 = vst [vmem:[%s196 + $0x30] sm:$0xff] %v745
        %1002 = vst [vmem:[%s196 + $0x38] sm:$0xff] %v746
        %1003 = vst [vmem:[%s196 + $0x40] sm:$0xff] %v747
        %1004 = vst [vmem:[%s196 + $0x48] sm:$0xff] %v748
        %1005 = vst [vmem:[%s196 + $0x50] sm:$0xff] %v749
        %1006 = vst [vmem:[%s196 + $0x58] sm:$0xff] %v750
        %1007 = vst [vmem:[%s196 + $0x60] sm:$0xff] %v751
        %1008 = vst [vmem:[%s196 + $0x68] sm:$0xff] %v752
        %1009 = vst [vmem:[%s196 + $0x70] sm:$0xff] %v753
        %1010 = vst [vmem:[%s196 + $0x78] sm:$0xff] %v754
        %1011 = vst [vmem:[%s196 + $0x80] sm:$0xff] %v755
        %1012 = vst [vmem:[%s196 + $0x88] sm:$0xff] %v756
        %1013 = vst [vmem:[%s196 + $0x90] sm:$0xff] %v757
        %1014 = vst [vmem:[%s196 + $0x98] sm:$0xff] %v758
        %1015 = vst [vmem:[%s196 + $0xa0] sm:$0xff] %v759
        %1016 = vst [vmem:[%s196 + $0xa8] sm:$0xff] %v760
        %1017 = vst [vmem:[%s196 + $0xb0] sm:$0xff] %v761
        %1018 = vst [vmem:[%s196 + $0xb8] sm:$0xff] %v762
        %1019 = vst [vmem:[%s196 + $0xc0] sm:$0xff] %v763
        %1020 = vst [vmem:[%s196 + $0xc8] sm:$0xff] %v764
        %1021 = vst [vmem:[%s196 + $0xd0] sm:$0xff] %v765
        %1022 = vst [vmem:[%s196 + $0xd8] sm:$0xff] %v766
        %1023 = vst [vmem:[%s196 + $0xe0] sm:$0xff] %v767
        %1024 = vst [vmem:[%s196 + $0xe8] sm:$0xff] %v768
        %1025 = vst [vmem:[%s196 + $0xf0] sm:$0xff] %v769
        %1026 = vst [vmem:[%s196 + $0xf8] sm:$0xff] %v770
        %1027 = vst [vmem:[%s196 + $0x100] sm:$0xff] %v771
        %1028 = vst [vmem:[%s196 + $0x108] sm:$0xff] %v772
        %1029 = vst [vmem:[%s196 + $0x110] sm:$0xff] %v773
        %1030 = vst [vmem:[%s196 + $0x118] sm:$0xff] %v774
        %1031 = vst [vmem:[%s196 + $0x120] sm:$0xff] %v775
        %1032 = vst [vmem:[%s196 + $0x128] sm:$0xff] %v776
        %1033 = vst [vmem:[%s196 + $0x130] sm:$0xff] %v777
        %1034 = vst [vmem:[%s196 + $0x138] sm:$0xff] %v778
        %1035 = vst [vmem:[%s196 + $0x140] sm:$0xff] %v779
        %1036 = vst [vmem:[%s196 + $0x148] sm:$0xff] %v780
        %1037 = vst [vmem:[%s196 + $0x150] sm:$0xff] %v781
        %1038 = vst [vmem:[%s196 + $0x158] sm:$0xff] %v782
        %1039 = vst [vmem:[%s196 + $0x160] sm:$0xff] %v783
        %1040 = vst [vmem:[%s196 + $0x168] sm:$0xff] %v784
        %1041 = vst [vmem:[%s196 + $0x170] sm:$0xff] %v785
        %1042 = vst [vmem:[%s196 + $0x178] sm:$0xff] %v786
        %1043 = vst [vmem:[%s196 + $0x180] sm:$0xff] %v787
        %1044 = vst [vmem:[%s196 + $0x188] sm:$0xff] %v788
        %1045 = vst [vmem:[%s196 + $0x190] sm:$0xff] %v789
        %1046 = vst [vmem:[%s196 + $0x198] sm:$0xff] %v790
        %1047 = vst [vmem:[%s196 + $0x1a0] sm:$0xff] %v791
        %1048 = vst [vmem:[%s196 + $0x1a8] sm:$0xff] %v792
        %1049 = vst [vmem:[%s196 + $0x1b0] sm:$0xff] %v793
        %1050 = vst [vmem:[%s196 + $0x1b8] sm:$0xff] %v794
        %1051 = vst [vmem:[%s196 + $0x1c0] sm:$0xff] %v795
        %1052 = vst [vmem:[%s196 + $0x1c8] sm:$0xff] %v796
        %1053 = vst [vmem:[%s196 + $0x1d0] sm:$0xff] %v797
        %1054 = vst [vmem:[%s196 + $0x1d8] sm:$0xff] %v798
        %1055 = vst [vmem:[%s196 + $0x1e0] sm:$0xff] %v799
        %1056 = vst [vmem:[%s196 + $0x1e8] sm:$0xff] %v800
        %1057 = vst [vmem:[%s196 + $0x1f0] sm:$0xff] %v801
        %1058 = vst [vmem:[%s196 + $0x1f8] sm:$0xff] %v802
        %1059 = vst [vmem:[%s196 + $0x200] sm:$0xff] %v803
        %1060 = vst [vmem:[%s196 + $0x208] sm:$0xff] %v804
        %1061 = vst [vmem:[%s196 + $0x210] sm:$0xff] %v805
        %1062 = vst [vmem:[%s196 + $0x218] sm:$0xff] %v806
        %1063 = vst [vmem:[%s196 + $0x220] sm:$0xff] %v807
        %1064 = vst [vmem:[%s196 + $0x228] sm:$0xff] %v808
        %1065 = vst [vmem:[%s196 + $0x230] sm:$0xff] %v809
        %1066 = vst [vmem:[%s196 + $0x238] sm:$0xff] %v810
        %1067 = vst [vmem:[%s196 + $0x240] sm:$0xff] %v811
        %1068 = vst [vmem:[%s196 + $0x248] sm:$0xff] %v812
        %1069 = vst [vmem:[%s196 + $0x250] sm:$0xff] %v813
        %1070 = vst [vmem:[%s196 + $0x258] sm:$0xff] %v814
        %1071 = vst [vmem:[%s196 + $0x260] sm:$0xff] %v815
        %1072 = vst [vmem:[%s196 + $0x268] sm:$0xff] %v816
        %1073 = vst [vmem:[%s196 + $0x270] sm:$0xff] %v817
        %1074 = vst [vmem:[%s196 + $0x278] sm:$0xff] %v818
        %1075 = vst [vmem:[%s196 + $0x280] sm:$0xff] %v819
        %1076 = vst [vmem:[%s196 + $0x288] sm:$0xff] %v820
        %1077 = vst [vmem:[%s196 + $0x290] sm:$0xff] %v821
        %1078 = vst [vmem:[%s196 + $0x298] sm:$0xff] %v822
        %1079 = vst [vmem:[%s196 + $0x2a0] sm:$0xff] %v823
        %1080 = vst [vmem:[%s196 + $0x2a8] sm:$0xff] %v824
        %1081 = vst [vmem:[%s196 + $0x2b0] sm:$0xff] %v825
        %1082 = vst [vmem:[%s196 + $0x2b8] sm:$0xff] %v826
        %1083 = vst [vmem:[%s196 + $0x2c0] sm:$0xff] %v827
        %1084 = vst [vmem:[%s196 + $0x2c8] sm:$0xff] %v828
        %1085 = vst [vmem:[%s196 + $0x2d0] sm:$0xff] %v829
        %1086 = vst [vmem:[%s196 + $0x2d8] sm:$0xff] %v830
        %1087 = vst [vmem:[%s196 + $0x2e0] sm:$0xff] %v831
        %1088 = vst [vmem:[%s196 + $0x2e8] sm:$0xff] %v832
        %1089 = vst [vmem:[%s196 + $0x2f0] sm:$0xff] %v833
        %1090 = vst [vmem:[%s196 + $0x2f8] sm:$0xff] %v834
        %1091 = vst [vmem:[%s196 + $0x300] sm:$0xff] %v835
        %1092 = vst [vmem:[%s196 + $0x308] sm:$0xff] %v836
        %1093 = vst [vmem:[%s196 + $0x310] sm:$0xff] %v837
        %1094 = vst [vmem:[%s196 + $0x318] sm:$0xff] %v838
        %1095 = vst [vmem:[%s196 + $0x320] sm:$0xff] %v839
        %1096 = vst [vmem:[%s196 + $0x328] sm:$0xff] %v840
        %1097 = vst [vmem:[%s196 + $0x330] sm:$0xff] %v841
        %1098 = vst [vmem:[%s196 + $0x338] sm:$0xff] %v842
        %1099 = vst [vmem:[%s196 + $0x340] sm:$0xff] %v843
        %1100 = vst [vmem:[%s196 + $0x348] sm:$0xff] %v844
        %1101 = vst [vmem:[%s196 + $0x350] sm:$0xff] %v845
        %1102 = vst [vmem:[%s196 + $0x358] sm:$0xff] %v846
        %1103 = vst [vmem:[%s196 + $0x360] sm:$0xff] %v847
        %1104 = vst [vmem:[%s196 + $0x368] sm:$0xff] %v848
        %1105 = vst [vmem:[%s196 + $0x370] sm:$0xff] %v849
        %1106 = vst [vmem:[%s196 + $0x378] sm:$0xff] %v850
        %1107 = vst [vmem:[%s196 + $0x380] sm:$0xff] %v851
        %1108 = vst [vmem:[%s196 + $0x388] sm:$0xff] %v852
        %1109 = vst [vmem:[%s196 + $0x390] sm:$0xff] %v853
        %1110 = vst [vmem:[%s196 + $0x398] sm:$0xff] %v854
        %1111 = vst [vmem:[%s196 + $0x3a0] sm:$0xff] %v855
        %1112 = vst [vmem:[%s196 + $0x3a8] sm:$0xff] %v856
        %1113 = vst [vmem:[%s196 + $0x3b0] sm:$0xff] %v857
        %1114 = vst [vmem:[%s196 + $0x3b8] sm:$0xff] %v858
        %1115 = vst [vmem:[%s196 + $0x3c0] sm:$0xff] %v859
        %1116 = vst [vmem:[%s196 + $0x3c8] sm:$0xff] %v860
        %1117 = vst [vmem:[%s196 + $0x3d0] sm:$0xff] %v861
        %1118 = vst [vmem:[%s196 + $0x3d8] sm:$0xff] %v862
        %1119 = vst [vmem:[%s196 + $0x3e0] sm:$0xff] %v863
        %1120 = vst [vmem:[%s196 + $0x3e8] sm:$0xff] %v864
        %1121 = vst [vmem:[%s196 + $0x3f0] sm:$0xff] %v865
        %1122 = vst [vmem:[%s196 + $0x3f8] sm:$0xff] %v866
        %1123 = vst [vmem:[%s196 + $0x400] sm:$0xff] %v867
        %1124 = vst [vmem:[%s196 + $0x408] sm:$0xff] %v868
        %1125 = vst [vmem:[%s196 + $0x410] sm:$0xff] %v869
        %1126 = vst [vmem:[%s196 + $0x418] sm:$0xff] %v870
        %1127 = vst [vmem:[%s196 + $0x420] sm:$0xff] %v871
        %1128 = vst [vmem:[%s196 + $0x428] sm:$0xff] %v872
        %1129 = vst [vmem:[%s196 + $0x430] sm:$0xff] %v873
        %1130 = vst [vmem:[%s196 + $0x438] sm:$0xff] %v874
        %1131 = vst [vmem:[%s196 + $0x440] sm:$0xff] %v875
        %1132 = vst [vmem:[%s196 + $0x448] sm:$0xff] %v876
        %1133 = vst [vmem:[%s196 + $0x450] sm:$0xff] %v877
        %1134 = vst [vmem:[%s196 + $0x458] sm:$0xff] %v878
        %1135 = vst [vmem:[%s196 + $0x460] sm:$0xff] %v879
        %1136 = vst [vmem:[%s196 + $0x468] sm:$0xff] %v880
        %1137 = vst [vmem:[%s196 + $0x470] sm:$0xff] %v881
        %1138 = vst [vmem:[%s196 + $0x478] sm:$0xff] %v882
        %1139 = vst [vmem:[%s196 + $0x480] sm:$0xff] %v883
        %1140 = vst [vmem:[%s196 + $0x488] sm:$0xff] %v884
        %1141 = vst [vmem:[%s196 + $0x490] sm:$0xff] %v885
        %1142 = vst [vmem:[%s196 + $0x498] sm:$0xff] %v886
        %1143 = vst [vmem:[%s196 + $0x4a0] sm:$0xff] %v887
        %1144 = vst [vmem:[%s196 + $0x4a8] sm:$0xff] %v888
        %1145 = vst [vmem:[%s196 + $0x4b0] sm:$0xff] %v889
        %1146 = vst [vmem:[%s196 + $0x4b8] sm:$0xff] %v890
        %1147 = vst [vmem:[%s196 + $0x4c0] sm:$0xff] %v891
        %1148 = vst [vmem:[%s196 + $0x4c8] sm:$0xff] %v892
        %1149 = vst [vmem:[%s196 + $0x4d0] sm:$0xff] %v893
        %1150 = vst [vmem:[%s196 + $0x4d8] sm:$0xff] %v894
        %1151 = vst [vmem:[%s196 + $0x4e0] sm:$0xff] %v895
        %1152 = vst [vmem:[%s196 + $0x4e8] sm:$0xff] %v896
        %1153 = vst [vmem:[%s196 + $0x4f0] sm:$0xff] %v897
        %1154 = vst [vmem:[%s196 + $0x4f8] sm:$0xff] %v898
        %1155 = vst [vmem:[%s196 + $0x500] sm:$0xff] %v899
        %1156 = vst [vmem:[%s196 + $0x508] sm:$0xff] %v900
        %1157 = vst [vmem:[%s196 + $0x510] sm:$0xff] %v901
        %1158 = vst [vmem:[%s196 + $0x518] sm:$0xff] %v902
        %1159 = vst [vmem:[%s196 + $0x520] sm:$0xff] %v903
        %1160 = vst [vmem:[%s196 + $0x528] sm:$0xff] %v904
        %1161 = vst [vmem:[%s196 + $0x530] sm:$0xff] %v905
        %1162 = vst [vmem:[%s196 + $0x538] sm:$0xff] %v906
        %1163 = vst [vmem:[%s196 + $0x540] sm:$0xff] %v907
        %1164 = vst [vmem:[%s196 + $0x548] sm:$0xff] %v908
        %1165 = vst [vmem:[%s196 + $0x550] sm:$0xff] %v909
        %1166 = vst [vmem:[%s196 + $0x558] sm:$0xff] %v910
        %1167 = vst [vmem:[%s196 + $0x560] sm:$0xff] %v911
        %1168 = vst [vmem:[%s196 + $0x568] sm:$0xff] %v912
        %1169 = vst [vmem:[%s196 + $0x570] sm:$0xff] %v913
        %1170 = vst [vmem:[%s196 + $0x578] sm:$0xff] %v914
        %1171 = vst [vmem:[%s196 + $0x580] sm:$0xff] %v915
        %1172 = vst [vmem:[%s196 + $0x588] sm:$0xff] %v916
        %1173 = vst [vmem:[%s196 + $0x590] sm:$0xff] %v917
        %1174 = vst [vmem:[%s196 + $0x598] sm:$0xff] %v918
        %1175 = vst [vmem:[%s196 + $0x5a0] sm:$0xff] %v919
        %1176 = vst [vmem:[%s196 + $0x5a8] sm:$0xff] %v920
        %1177 = vst [vmem:[%s196 + $0x5b0] sm:$0xff] %v921
        %1178 = vst [vmem:[%s196 + $0x5b8] sm:$0xff] %v922
        %1179 = vst [vmem:[%s196 + $0x5c0] sm:$0xff] %v923
        %1180 = vst [vmem:[%s196 + $0x5c8] sm:$0xff] %v924
        %1181 = vst [vmem:[%s196 + $0x5d0] sm:$0xff] %v925
        %1182 = vst [vmem:[%s196 + $0x5d8] sm:$0xff] %v926
        %1183 = vst [vmem:[%s196 + $0x5e0] sm:$0xff] %v927
        %1184 = vst [vmem:[%s196 + $0x5e8] sm:$0xff] %v928
        %1185 = vst [vmem:[%s196 + $0x5f0] sm:$0xff] %v929
        %1186 = vst [vmem:[%s196 + $0x5f8] sm:$0xff] %v930
        %1187 = vst [vmem:[%s196 + $0x600] sm:$0xff] %v931
        %1188 = vst [vmem:[%s196 + $0x608] sm:$0xff] %v932
        %1189 = vst [vmem:[%s196 + $0x610] sm:$0xff] %v933
        %1190 = vst [vmem:[%s196 + $0x618] sm:$0xff] %v934
        %1191 = vst [vmem:[%s196 + $0x620] sm:$0xff] %v935
        %1192 = vst [vmem:[%s196 + $0x628] sm:$0xff] %v936
        %1193 = vst [vmem:[%s196 + $0x630] sm:$0xff] %v937
        %1194 = vst [vmem:[%s196 + $0x638] sm:$0xff] %v938
        %1195 = vst [vmem:[%s196 + $0x640] sm:$0xff] %v939
        %1196 = vst [vmem:[%s196 + $0x648] sm:$0xff] %v940
        %1197 = vst [vmem:[%s196 + $0x650] sm:$0xff] %v941
        %1198 = vst [vmem:[%s196 + $0x658] sm:$0xff] %v942
        %1199 = vst [vmem:[%s196 + $0x660] sm:$0xff] %v943
        %1200 = vst [vmem:[%s196 + $0x668] sm:$0xff] %v944
        %1201 = vst [vmem:[%s196 + $0x670] sm:$0xff] %v945
        %1202 = vst [vmem:[%s196 + $0x678] sm:$0xff] %v946
        %1203 = vst [vmem:[%s196 + $0x680] sm:$0xff] %v947
        %1204 = vst [vmem:[%s196 + $0x688] sm:$0xff] %v948
        %1205 = vst [vmem:[%s196 + $0x690] sm:$0xff] %v949
        %1206 = vst [vmem:[%s196 + $0x698] sm:$0xff] %v950
        %1207 = vst [vmem:[%s196 + $0x6a0] sm:$0xff] %v951
        %1208 = vst [vmem:[%s196 + $0x6a8] sm:$0xff] %v952
        %1209 = vst [vmem:[%s196 + $0x6b0] sm:$0xff] %v953
        %1210 = vst [vmem:[%s196 + $0x6b8] sm:$0xff] %v954
        %1211 = vst [vmem:[%s196 + $0x6c0] sm:$0xff] %v955
        %1212 = vst [vmem:[%s196 + $0x6c8] sm:$0xff] %v956
        %1213 = vst [vmem:[%s196 + $0x6d0] sm:$0xff] %v957
        %1214 = vst [vmem:[%s196 + $0x6d8] sm:$0xff] %v958
        %1215 = vst [vmem:[%s196 + $0x6e0] sm:$0xff] %v959
        %1216 = vst [vmem:[%s196 + $0x6e8] sm:$0xff] %v960
        %1217 = vst [vmem:[%s196 + $0x6f0] sm:$0xff] %v961
        %1218 = vst [vmem:[%s196 + $0x6f8] sm:$0xff] %v962
        %1219 = vst [vmem:[%s196 + $0x700] sm:$0xff] %v963
        %1220 = vst [vmem:[%s196 + $0x708] sm:$0xff] %v964
        %1221 = vst [vmem:[%s196 + $0x710] sm:$0xff] %v965
        %1222 = vst [vmem:[%s196 + $0x718] sm:$0xff] %v966
        %1223 = vst [vmem:[%s196 + $0x720] sm:$0xff] %v967
        %1224 = vst [vmem:[%s196 + $0x728] sm:$0xff] %v968
        %1225 = vst [vmem:[%s196 + $0x730] sm:$0xff] %v969
        %1226 = vst [vmem:[%s196 + $0x738] sm:$0xff] %v970
        %1227 = vst [vmem:[%s196 + $0x740] sm:$0xff] %v971
        %1228 = vst [vmem:[%s196 + $0x748] sm:$0xff] %v972
        %1229 = vst [vmem:[%s196 + $0x750] sm:$0xff] %v973
        %1230 = vst [vmem:[%s196 + $0x758] sm:$0xff] %v974
        %1231 = vst [vmem:[%s196 + $0x760] sm:$0xff] %v975
        %1232 = vst [vmem:[%s196 + $0x768] sm:$0xff] %v976
        %1233 = vst [vmem:[%s196 + $0x770] sm:$0xff] %v977
        %1234 = vst [vmem:[%s196 + $0x778] sm:$0xff] %v978
        %1235 = vst [vmem:[%s196 + $0x780] sm:$0xff] %v979
        %1236 = vst [vmem:[%s196 + $0x788] sm:$0xff] %v980
        %1237 = vst [vmem:[%s196 + $0x790] sm:$0xff] %v981
        %1238 = vst [vmem:[%s196 + $0x798] sm:$0xff] %v982
        %1239 = vst [vmem:[%s196 + $0x7a0] sm:$0xff] %v983
        %1240 = vst [vmem:[%s196 + $0x7a8] sm:$0xff] %v984
        %1241 = vst [vmem:[%s196 + $0x7b0] sm:$0xff] %v985
        %1242 = vst [vmem:[%s196 + $0x7b8] sm:$0xff] %v986
        %1243 = vst [vmem:[%s196 + $0x7c0] sm:$0xff] %v987
        %1244 = vst [vmem:[%s196 + $0x7c8] sm:$0xff] %v988
        %1245 = vst [vmem:[%s196 + $0x7d0] sm:$0xff] %v989
        %1246 = vst [vmem:[%s196 + $0x7d8] sm:$0xff] %v990
        %1247 = vst [vmem:[%s196 + $0x7e0] sm:$0xff] %v991
        %1248 = vst [vmem:[%s196 + $0x7e8] sm:$0xff] %v992
        %1249 = vst [vmem:[%s196 + $0x7f0] sm:$0xff] %v993
        %1250 = vst [vmem:[%s196 + $0x7f8] sm:$0xff] %v994
        %s1251 = sand.u32 %s95, 1
        %s1252 = scalar_lea.sflag [#allocation4], %s1251
        %s1253 = sand.u32 %s95, 1
        %s1254 = smul.addr %s1253, 2048
        %s1255 = scalar_lea.vmem [#allocation5], %s1254
        // Predicated region
        $region33: #{tpu_custom_call.1} parent=27 // pred_check
          %p1256 = pneg %p105
        $region34: #{tpu_custom_call.1} parent=27 // pred_check_branch
          %1258 = sbr.rel (%p1256) target = $region36
        $region35: #{tpu_custom_call.1} parent=27 // pred_region
          %s1259 = smul.u32 2, %s23
          %s1260 = smul.u32 128, %s24
          %s1262 = ssub.s32 32768, 32768
          %1263 = vsyncadd %s1252, %s1262
          %s1264 = smul.addr %s1259, 128
          %s1265 = sadd.s32 %s1260, %s1264
          %s1266 = smul.addr %s1265, 128
          %s1267 = scalar_lea.hbm %s2, %s1266
          %s1268 = sshll.u32 %s1255, 4
          %s1269 = int_to_ptr.vmem [resolvable:$true] %s1268
          %1274 = dma.vmem_to_hbm [thread:$0]  %s1269, 32768, %s1267, %s1252, 16384, 16384, 1024
        $region36: #{tpu_custom_call.1} parent=27 // pred_fallthru
          _
      $region28: #{tpu_custom_call.1} parent=5 // pred_fallthru
        _
      %p1275 = scmp.le.s32.totalorder 2, %s14
      // Predicated region
      $region37: #{tpu_custom_call.1} parent=5 // pred_check
        %p1276 = pneg %p1275
      $region38: #{tpu_custom_call.1} parent=5 // pred_check_branch
        %1278 = sbr.rel (%p1276) target = $region40
      $region39: #{tpu_custom_call.1} parent=5 // pred_region
        %s1279 = ssub.s32 %s14, 2
        // Predicated region
        $region41: #{tpu_custom_call.1} parent=39 // pred_check
          %p1280 = pneg %p111
        $region42: #{tpu_custom_call.1} parent=39 // pred_check_branch
          %1282 = sbr.rel (%p1280) target = $region44
        $region43: #{tpu_custom_call.1} parent=39 // pred_region
          %s1283 = sand.u32 %s96, 1
          %s1284 = scalar_lea.sflag [#allocation4], %s1283
          %s1285 = sand.u32 %s96, 1
          %s1286 = smul.addr %s1285, 2048
          %s1287 = scalar_lea.vmem [#allocation5], %s1286
          %1288 = dma.done %s1284, 32768
        $region44: #{tpu_custom_call.1} parent=39 // pred_fallthru
          _
      $region40: #{tpu_custom_call.1} parent=5 // pred_fallthru
        _
    $region6: #{tpu_custom_call.1} parent=1 // loop_footer
      %s18 = sadd.s32 1, %s14
    $region7: #{tpu_custom_call.1} parent=1 // loop_footer_branch
      %13 = sbr.rel target = $region3
    $region8: #{tpu_custom_call.1} parent=1 // loop_exit
      _
    %1289 = vsyncpa [#allocation3], 1
    %s1290 = scalar_lea.sflag [#allocation3], 1
    %1291 = vsyncpa %s1290, 1
    %1292 = vsyncpa [#allocation4], 1
    %s1293 = scalar_lea.sflag [#allocation4], 1
    %1294 = vsyncpa %s1293, 1

</llo_original>
